<compile_context>
chip_gen: v7x
topology: tpu7x:2x2x1
jax: 0.10.0
libtpu: 0.0.40
codegen_flags: <defaults>
</compile_context>

<pallas_src>
import functools

import jax
import jax.numpy as jnp
import numpy as np
from jax import lax
from jax.experimental import pallas as pl
from jax.experimental.pallas import tpu as pltpu


def _omnivore_kernel(x_ref, wh_ref, bh_ref, vn_ref, out_ref, acc_ref, *, inv_s):
    s_idx = pl.program_id(1)

    @pl.when(s_idx == 0)
    def _init():
        acc_ref[...] = jnp.zeros_like(acc_ref)

    # Lane-shaped accumulation: add static 128-lane slices of the
    # (b_tile, C, s_tile) block into a (b_tile, C, 128) f32 accumulator.
    # VALU adds only on the hot path; the cross-lane reduce waits for finalize.
    n_slices = x_ref.shape[-1] // 128
    acc = acc_ref[...]
    for j in range(n_slices):                                   # static unroll
        sl = x_ref[:, :, j * 128:(j + 1) * 128]                 # aligned vreg slice
        acc = acc + sl.astype(jnp.float32)
    acc_ref[...] = acc

    @pl.when(s_idx == pl.num_programs(1) - 1)
    def _finalize():
        # TODO(synk): the real Omnivore backbone (video Swin-3D loaded from
        # torch.hub) has no single-kernel Pallas equivalent; it is replaced by a
        # synthetic backbone (global average pool over T*H*W + linear classifier)
        # so the downstream hardmax + verb/noun matmul semantics are exact.
        feat = jnp.sum(acc_ref[...], axis=-1) * inv_s                       # [b_tile, C]
        logits = jnp.dot(feat, wh_ref[...],
                         preferred_element_type=jnp.float32) + bh_ref[...]  # [b_tile, A]

        # hardmax: one-hot of argmax along the class axis (first max wins on
        # ties), matching torch.zeros_like(y).scatter_(1, argmax(y, -1, True), 1.)
        a = logits.shape[-1]
        col = lax.broadcasted_iota(jnp.int32, logits.shape, 1)             # class ids
        maxval = jnp.max(logits, axis=-1, keepdims=True)                   # [b_tile, 1]
        first_idx = jnp.min(jnp.where(logits == maxval, col, a),
                            axis=-1, keepdims=True)                        # [b_tile, 1]
        onehot = (col == first_idx).astype(vn_ref.dtype)                   # exact 0/1

        # fused [verb | noun | pad] matmul -> one lane-dense >=128-wide store.
        out_ref[...] = jnp.dot(onehot, vn_ref[...],
                               preferred_element_type=jnp.float32)


def _largest_divisor_tile(total, unit, cap):
    """Largest multiple of `unit` dividing `total` that is <= cap.

    `total` is guaranteed (by S padding) to be a multiple of `unit`, so `unit`
    is always a valid fallback and no silent full-size blowup can occur.
    """
    t = max(unit, (min(cap, total) // unit) * unit)
    while t > unit:
        if total % t == 0:
            return t
        t -= unit
    return unit


def omnivore_forward(x, w_head, b_head, verb_matrix, noun_matrix):
    """x: [B, C, T, H, W] video. Returns [verb [B, V], noun [B, N]] (f32)."""
    B, C, T, H, W = x.shape
    S = T * H * W
    A = w_head.shape[1]
    V = verb_matrix.shape[1]
    N = noun_matrix.shape[1]

    # ---- glue reshapes / packing (no compute, no extra x pass over HBM) -------
    x3 = x.reshape(B, C, S)                    # metadata reshape; keep producer dtype
    # pad S to a lane multiple; zero padding is exact because inv_s uses true S.
    s_pad = max(128, ((S + 127) // 128) * 128)
    if s_pad != S:
        x3 = jnp.pad(x3, ((0, 0), (0, 0), (0, s_pad - S)))
    x_bytes = x3.dtype.itemsize

    wh = w_head.astype(jnp.float32)            # keep f32: bit-stable argmax vs f32 model
    b2 = b_head.reshape(1, A).astype(jnp.float32)
    # fuse verb + noun tables into one lane-dense [A, out_pad] slab; values are
    # exactly 0/1 so bf16 storage is exact and halves VMEM/HBM residency.
    out_pad = max(128, ((V + N + 127) // 128) * 128)
    vn = jnp.zeros((A, out_pad), jnp.bfloat16)
    vn = vn.at[:, :V].set(verb_matrix.astype(jnp.bfloat16))
    vn = vn.at[:, V:V + N].set(noun_matrix.astype(jnp.bfloat16))

    # ---- tiling ----------------------------------------------------------------
    # b_tile multiple of 8 keeps the (b_tile, out_pad) store sublane-aligned; with
    # B >= 16 the "parallel" batch axis has >= 2 blocks so v7x megacore engages.
    # TODO(synk): for B < 16, split the S reduction across cores instead.
    b_tile = 8 if B % 8 == 0 else B

    # ---- per-generation VMEM budget ---------------------------------------------
    try:
        phys_vmem = int(pltpu.get_tpu_info().vmem_capacity_bytes)
    except Exception:
        phys_vmem = 64 * 1024 * 1024           # v7x has the smallest physical VMEM

    weights_bytes = 2 * (C * A * 4 + A * 4 + A * out_pad * 2)     # double-buffered
    out_bytes = 2 * b_tile * out_pad * 4
    acc_bytes = b_tile * C * 128 * 4
    resident = weights_bytes + out_bytes + acc_bytes
    # Give the streaming x double-buffer the bulk of ~70% of physical VMEM,
    # capped so the statically unrolled lane loop stays short.
    x_buf_budget = (int(0.70 * phys_vmem) - resident) // 2
    x_buf_budget = max(b_tile * C * 128 * x_bytes,
                       min(x_buf_budget, 24 * 1024 * 1024))
    lane_cap = min(max(128, x_buf_budget // (b_tile * C * x_bytes)), 16384)
    s_tile = _largest_divisor_tile(s_pad, 128, lane_cap)
    grid = (B // b_tile, s_pad // s_tile)

    vmem_need = resident + 2 * b_tile * C * s_tile * x_bytes
    vmem_limit = int(min(max(vmem_need + (4 << 20), 32 << 20),
                         int(0.9 * phys_vmem)))
    vmem_limit = max(vmem_limit, vmem_need + (2 << 20))

    cost = pl.CostEstimate(
        flops=B * C * s_pad + 2 * B * C * A + 4 * B * A + 2 * B * A * out_pad,
        transcendentals=0,
        bytes_accessed=(B * C * s_pad * x_bytes + C * A * 4 + A * 4
                        + A * out_pad * 2 + B * out_pad * 4),
    )

    kernel = functools.partial(_omnivore_kernel, inv_s=1.0 / float(S))

    out = pl.pallas_call(
        kernel,
        out_shape=jax.ShapeDtypeStruct((B, out_pad), jnp.float32),
        grid_spec=pltpu.PrefetchScalarGridSpec(
            num_scalar_prefetch=0,
            grid=grid,
            in_specs=[
                pl.BlockSpec((b_tile, C, s_tile), lambda b, s: (b, 0, s)),  # x stream
                pl.BlockSpec((C, A), lambda b, s: (0, 0)),                  # head W (f32)
                pl.BlockSpec((1, A), lambda b, s: (0, 0)),                  # head bias
                pl.BlockSpec((A, out_pad), lambda b, s: (0, 0)),            # verb|noun bf16
            ],
            out_specs=pl.BlockSpec((b_tile, out_pad), lambda b, s: (b, 0)),
            scratch_shapes=[pltpu.VMEM((b_tile, C, 128), jnp.float32)],
        ),
        compiler_params=pltpu.CompilerParams(
            dimension_semantics=("parallel", "arbitrary"),
            vmem_limit_bytes=vmem_limit,
        ),
        cost_estimate=cost,
    )(x3, wh, b2, vn)

    return [out[:, :V], out[:, V:V + N]]


if __name__ == "__main__":
    # small, tile-friendly shapes; B=16 -> two batch blocks on the parallel axis
    B, C, T, H, W = 16, 8, 4, 16, 16     # video: batch, channels, frames, height, width
    A, V, N = 256, 16, 32                # action classes, verb classes, noun classes

    key = jax.random.PRNGKey(0)
    kx, kw, kb = jax.random.split(key, 3)
    x = jax.random.normal(kx, (B, C, T, H, W), jnp.float32)
    w_head = jax.random.normal(kw, (C, A), jnp.float32) * 0.02
    b_head = jax.random.normal(kb, (A,), jnp.float32) * 0.02

    # deterministic verb/noun transform matrices (replaces CSV-derived buffers):
    # action class a maps to verb (a % V) and noun (a % N) -> one 1.0 per row.
    a_ids = jnp.arange(A)
    verb_matrix = (a_ids[:, None] % V == jnp.arange(V)[None, :]).astype(jnp.float32)
    noun_matrix = (a_ids[:, None] % N == jnp.arange(N)[None, :]).astype(jnp.float32)

    verb, noun = omnivore_forward(x, w_head, b_head, verb_matrix, noun_matrix)
    jax.block_until_ready((verb, noun))

    # plain-JAX reference with the same f32 numerics as the kernel.
    feat = jnp.mean(x.reshape(B, C, -1), axis=-1)
    logits = feat @ w_head + b_head
    onehot = jax.nn.one_hot(jnp.argmax(logits, axis=-1), A, dtype=jnp.float32)
    ref_verb = onehot @ verb_matrix
    ref_noun = onehot @ noun_matrix
    assert np.allclose(np.asarray(verb), np.asarray(ref_verb), atol=1e-5)
    assert np.allclose(np.asarray(noun), np.asarray(ref_noun), atol=1e-5)

    print("KERNEL_OK")
</pallas_src>

<mosaic_0001>
module attributes {stable_mosaic.version = 11 : i64} {
  func.func @_omnivore_kernel(%arg0: i32, %arg1: i32, %arg2: memref<8x8x1024xf32, #tpu.memory_space<vmem>>, %arg3: memref<8x256xf32, #tpu.memory_space<vmem>>, %arg4: memref<1x256xf32, #tpu.memory_space<vmem>>, %arg5: memref<256x128xbf16, #tpu.memory_space<vmem>>, %arg6: memref<8x128xf32, #tpu.memory_space<vmem>>, %arg7: memref<8x8x128xf32, #tpu.memory_space<vmem>>) attributes {dimension_semantics = [#tpu.dimension_semantics<parallel>, #tpu.dimension_semantics<arbitrary>], iteration_bounds = array<i64: 2, 1>, scalar_prefetch = 0 : i64, scratch_operands = 1 : i64, tpu.core_type = #tpu.core_type<tc>, window_params = [{transform_indices = @transform_0, window_bounds = array<i64: 8, 8, 1024>}, {pipeline_mode = #tpu.pipeline_mode<synchronous>, transform_indices = @transform_1, window_bounds = array<i64: 8, 256>}, {pipeline_mode = #tpu.pipeline_mode<synchronous>, transform_indices = @transform_2, window_bounds = array<i64: 1, 256>}, {pipeline_mode = #tpu.pipeline_mode<synchronous>, transform_indices = @transform_3, window_bounds = array<i64: 256, 128>}, {transform_indices = @transform_4, window_bounds = array<i64: 8, 128>}]} {
    %c0_i32 = arith.constant 0 : i32
    %0 = arith.cmpi eq, %arg1, %c0_i32 : i32
    %1 = arith.extui %0 : i1 to i32
    %c0_i32_0 = arith.constant 0 : i32
    %2 = arith.cmpi ne, %1, %c0_i32_0 : i32
    scf.if %2 {
      %cst = arith.constant 0.000000e+00 : f32
      %24 = vector.broadcast %cst : f32 to vector<8x8x128xf32>
      %c0_25 = arith.constant 0 : index
      %c0_26 = arith.constant 0 : index
      %c0_27 = arith.constant 0 : index
      %25 = vector.load %arg7[%c0_25, %c0_26, %c0_27] : memref<8x8x128xf32, #tpu.memory_space<vmem>>, vector<8x8x128xf32>
      tpu.vector_store %arg7[%c0_25, %c0_26, %c0_27], %24 {strides = array<i32>} : memref<8x8x128xf32, #tpu.memory_space<vmem>>, vector<8x8x128xf32>,
    } else {
    }
    %c0 = arith.constant 0 : index
    %c0_1 = arith.constant 0 : index
    %c0_2 = arith.constant 0 : index
    %3 = vector.load %arg7[%c0, %c0_1, %c0_2] : memref<8x8x128xf32, #tpu.memory_space<vmem>>, vector<8x8x128xf32>
    %c0_3 = arith.constant 0 : index
    %c0_4 = arith.constant 0 : index
    %c0_5 = arith.constant 0 : index
    %4 = vector.load %arg2[%c0_3, %c0_4, %c0_5] : memref<8x8x1024xf32, #tpu.memory_space<vmem>>, vector<8x8x128xf32>
    %5 = arith.addf %3, %4 : vector<8x8x128xf32>
    %c0_6 = arith.constant 0 : index
    %c0_7 = arith.constant 0 : index
    %c128 = arith.constant 128 : index
    %6 = vector.load %arg2[%c0_6, %c0_7, %c128] : memref<8x8x1024xf32, #tpu.memory_space<vmem>>, vector<8x8x128xf32>
    %7 = arith.addf %5, %6 : vector<8x8x128xf32>
    %c0_8 = arith.constant 0 : index
    %c0_9 = arith.constant 0 : index
    %c256 = arith.constant 256 : index
    %8 = vector.load %arg2[%c0_8, %c0_9, %c256] : memref<8x8x1024xf32, #tpu.memory_space<vmem>>, vector<8x8x128xf32>
    %9 = arith.addf %7, %8 : vector<8x8x128xf32>
    %c0_10 = arith.constant 0 : index
    %c0_11 = arith.constant 0 : index
    %c384 = arith.constant 384 : index
    %10 = vector.load %arg2[%c0_10, %c0_11, %c384] : memref<8x8x1024xf32, #tpu.memory_space<vmem>>, vector<8x8x128xf32>
    %11 = arith.addf %9, %10 : vector<8x8x128xf32>
    %c0_12 = arith.constant 0 : index
    %c0_13 = arith.constant 0 : index
    %c512 = arith.constant 512 : index
    %12 = vector.load %arg2[%c0_12, %c0_13, %c512] : memref<8x8x1024xf32, #tpu.memory_space<vmem>>, vector<8x8x128xf32>
    %13 = arith.addf %11, %12 : vector<8x8x128xf32>
    %c0_14 = arith.constant 0 : index
    %c0_15 = arith.constant 0 : index
    %c640 = arith.constant 640 : index
    %14 = vector.load %arg2[%c0_14, %c0_15, %c640] : memref<8x8x1024xf32, #tpu.memory_space<vmem>>, vector<8x8x128xf32>
    %15 = arith.addf %13, %14 : vector<8x8x128xf32>
    %c0_16 = arith.constant 0 : index
    %c0_17 = arith.constant 0 : index
    %c768 = arith.constant 768 : index
    %16 = vector.load %arg2[%c0_16, %c0_17, %c768] : memref<8x8x1024xf32, #tpu.memory_space<vmem>>, vector<8x8x128xf32>
    %17 = arith.addf %15, %16 : vector<8x8x128xf32>
    %c0_18 = arith.constant 0 : index
    %c0_19 = arith.constant 0 : index
    %c896 = arith.constant 896 : index
    %18 = vector.load %arg2[%c0_18, %c0_19, %c896] : memref<8x8x1024xf32, #tpu.memory_space<vmem>>, vector<8x8x128xf32>
    %19 = arith.addf %17, %18 : vector<8x8x128xf32>
    %c0_20 = arith.constant 0 : index
    %c0_21 = arith.constant 0 : index
    %c0_22 = arith.constant 0 : index
    %20 = vector.load %arg7[%c0_20, %c0_21, %c0_22] : memref<8x8x128xf32, #tpu.memory_space<vmem>>, vector<8x8x128xf32>
    tpu.vector_store %arg7[%c0_20, %c0_21, %c0_22], %19 {strides = array<i32>} : memref<8x8x128xf32, #tpu.memory_space<vmem>>, vector<8x8x128xf32>,
    %c0_i32_23 = arith.constant 0 : i32
    %21 = arith.cmpi eq, %arg1, %c0_i32_23 : i32
    %22 = arith.extui %21 : i1 to i32
    %c0_i32_24 = arith.constant 0 : i32
    %23 = arith.cmpi ne, %22, %c0_i32_24 : i32
    scf.if %23 {
      %c0_25 = arith.constant 0 : index
      %c0_26 = arith.constant 0 : index
      %c0_27 = arith.constant 0 : index
      %24 = vector.load %arg7[%c0_25, %c0_26, %c0_27] : memref<8x8x128xf32, #tpu.memory_space<vmem>>, vector<8x8x128xf32>
      %cst = arith.constant dense<0.000000e+00> : vector<8x8xf32>
      %25 = vector.multi_reduction <add>, %24, %cst [2] : vector<8x8x128xf32> to vector<8x8xf32>
      %cst_28 = arith.constant 9.765625E-4 : f32
      %26 = vector.broadcast %cst_28 : f32 to vector<8x8xf32>
      %27 = arith.mulf %25, %26 : vector<8x8xf32>
      %c0_29 = arith.constant 0 : index
      %c0_30 = arith.constant 0 : index
      %28 = vector.load %arg3[%c0_29, %c0_30] : memref<8x256xf32, #tpu.memory_space<vmem>>, vector<8x256xf32>
      %cst_31 = arith.constant dense<0.000000e+00> : vector<8x256xf32>
      %29 = tpu.matmul %27, %28, %cst_31 {dimension_numbers = #tpu.dot_dimension_numbers<[1], [0], [0], [1], [0, 0, 1, 1], [], []>} : vector<8x8xf32>, vector<8x256xf32>, vector<8x256xf32> -> vector<8x256xf32>
      %c0_32 = arith.constant 0 : index
      %c0_33 = arith.constant 0 : index
      %30 = vector.load %arg4[%c0_32, %c0_33] : memref<1x256xf32, #tpu.memory_space<vmem>>, vector<1x256xf32>
      %31 = vector.broadcast %30 : vector<1x256xf32> to vector<8x256xf32>
      %32 = arith.addf %29, %31 : vector<8x256xf32>
      %33 = tpu.iota {dimensions = array<i32: 1>} : vector<8x256xi32>
      %cst_34 = arith.constant dense<0xFF800000> : vector<8xf32>
      %34 = vector.multi_reduction <maximumf>, %32, %cst_34 [1] : vector<8x256xf32> to vector<8xf32>
      %35 = vector.shape_cast %34 : vector<8xf32> to vector<8x1xf32>
      %36 = vector.broadcast %35 : vector<8x1xf32> to vector<8x256xf32>
      %37 = arith.cmpf oeq, %32, %36 : vector<8x256xf32>
      %c256_i32 = arith.constant 256 : i32
      %38 = vector.broadcast %c256_i32 : i32 to vector<8x256xi32>
      %39 = arith.select %37, %33, %38 : vector<8x256xi1>, vector<8x256xi32>
      %cst_35 = arith.constant dense<2147483647> : vector<8xi32>
      %40 = vector.multi_reduction <minsi>, %39, %cst_35 [1] : vector<8x256xi32> to vector<8xi32>
      %41 = vector.shape_cast %40 : vector<8xi32> to vector<8x1xi32>
      %42 = vector.broadcast %41 : vector<8x1xi32> to vector<8x256xi32>
      %43 = arith.cmpi eq, %33, %42 : vector<8x256xi32>
      %44 = arith.extui %43 : vector<8x256xi1> to vector<8x256xi32>
      %45 = arith.sitofp %44 : vector<8x256xi32> to vector<8x256xf32>
      %46 = arith.truncf %45 : vector<8x256xf32> to vector<8x256xbf16>
      %c0_36 = arith.constant 0 : index
      %c0_37 = arith.constant 0 : index
      %47 = vector.load %arg5[%c0_36, %c0_37] : memref<256x128xbf16, #tpu.memory_space<vmem>>, vector<256x128xbf16>
      %cst_38 = arith.constant dense<0.000000e+00> : vector<8x128xf32>
      %48 = tpu.matmul %46, %47, %cst_38 {dimension_numbers = #tpu.dot_dimension_numbers<[1], [0], [0], [1], [0, 0, 1, 1], [], []>} : vector<8x256xbf16>, vector<256x128xbf16>, vector<8x128xf32> -> vector<8x128xf32>
      %c0_39 = arith.constant 0 : index
      %c0_40 = arith.constant 0 : index
      %49 = vector.load %arg6[%c0_39, %c0_40] : memref<8x128xf32, #tpu.memory_space<vmem>>, vector<8x128xf32>
      tpu.vector_store %arg6[%c0_39, %c0_40], %48 {strides = array<i32>} : memref<8x128xf32, #tpu.memory_space<vmem>>, vector<8x128xf32>,
    } else {
    }
    return
  }
  func.func @transform_0(%arg0: i32, %arg1: i32) -> (i32, i32, i32) {
    %c0_i32 = arith.constant 0 : i32
    %c0_i32_0 = arith.constant 0 : i32
    return %arg0, %c0_i32, %arg1 : i32, i32, i32
  }
  func.func @transform_1(%arg0: i32, %arg1: i32) -> (i32, i32) {
    %c0_i32 = arith.constant 0 : i32
    %c0_i32_0 = arith.constant 0 : i32
    %c0_i32_1 = arith.constant 0 : i32
    return %c0_i32, %c0_i32_0 : i32, i32
  }
  func.func @transform_2(%arg0: i32, %arg1: i32) -> (i32, i32) {
    %c0_i32 = arith.constant 0 : i32
    %c0_i32_0 = arith.constant 0 : i32
    %c0_i32_1 = arith.constant 0 : i32
    return %c0_i32, %c0_i32_0 : i32, i32
  }
  func.func @transform_3(%arg0: i32, %arg1: i32) -> (i32, i32) {
    %c0_i32 = arith.constant 0 : i32
    %c0_i32_0 = arith.constant 0 : i32
    %c0_i32_1 = arith.constant 0 : i32
    return %c0_i32, %c0_i32_0 : i32, i32
  }
  func.func @transform_4(%arg0: i32, %arg1: i32) -> (i32, i32) {
    %c0_i32 = arith.constant 0 : i32
    %c0_i32_0 = arith.constant 0 : i32
    return %arg0, %c0_i32 : i32, i32
  }
}

</mosaic_0001>

<llo_original>
// kernel: tpu_custom_call.1
$region0: #{tpu_custom_call.1}
  #allocation0 [shape = 'u32[]', space=smem, size = 0x4, offset = 0x4, fixed_abs, tag = 'smem constant byte address 0x4 - core index']
  #allocation1 [shape = 'u32[144,128]{1,0:T(1,128)}', space=vmem, size = 0x12000, scoped, tag = 'internal scratch']
  #allocation2 [shape = 'f32[8,8,128]{2,1,0:T(8,128)}', space=vmem, size = 0x8000, scoped, tag = 'scratch operand']
  %s0 = inlined_call_operand.hbm [shape: f32[16,8,1024], index: 0, kind: input, shape index: {}]
  %s1 = inlined_call_operand.hbm [shape: f32[8,256], index: 1, kind: input, shape index: {}]
  %s2 = inlined_call_operand.vmem [shape: f32[1,256], index: 2, kind: input, shape index: {}]
  %s3 = inlined_call_operand.hbm [shape: bf16[256,128], index: 3, kind: input, shape index: {}]
  %s4 = inlined_call_operand.hbm [shape: f32[16,128], index: 4, kind: output, shape index: {}]
  %s5 = sld [smem:[#allocation0]]
  $region69: #{tpu_custom_call.1} parent=0
    _
  %s7 = ssub.s32 1, %s5
  %s8 = scalar_select 0, %s7, %s5
  $region1: #{tpu_custom_call.1} parent=0
    #allocation3 [shape = 'u8[524288]{0}', space=vmem, size = 0x80000, scoped, tag = 'input window, operand 0']
    #allocation4 [shape = 's32[2]{0}', space=sflag, size = 0x8, scoped, tag = 'scoped memory for tpu_custom_call.1']
    #allocation5 [shape = 's32[2]{0}', space=sflag, size = 0x8, scoped, tag = 'scoped memory for tpu_custom_call.1']
    #allocation6 [shape = 'u8[8192]{0}', space=vmem, size = 0x2000, scoped, tag = 'input window, operand 1, single buffered']
    #allocation7 [shape = 's32[1]{0}', space=sflag, size = 0x4, scoped, tag = 'scoped memory for tpu_custom_call.1']
    #allocation8 [shape = 'u8[65536]{0}', space=vmem, size = 0x10000, scoped, tag = 'input window, operand 3, single buffered']
    #allocation9 [shape = 'u8[8192]{0}', space=vmem, size = 0x2000, scoped, tag = 'output window, operand 0']
    %9 = vsyncpa [#allocation4], 0
    %s10 = scalar_lea.sflag [#allocation4], 1
    %11 = vsyncpa %s10, 0
    %12 = vsyncpa [#allocation7], 0
    %13 = vsyncpa [#allocation5], 0
    %s14 = scalar_lea.sflag [#allocation5], 1
    %15 = vsyncpa %s14, 0
    loop: start=0, step=1, limit=4
    $region2: #{tpu_custom_call.1} parent=1 // loop_pre_header
      _
    $region3: #{tpu_custom_call.1} parent=1 // loop_header
      %s17 = sphi 0, %s21
      %p18 = scmp.ge.s32.totalorder %s17, 4
      %s24 = sphi 0, %s36
      %s25 = sphi 0, %s32
      %s26 = sphi 0, %s24
      %s27 = sphi 0, %s25
      %s28 = sphi 0, %s26
      %s29 = sphi 0, %s27
      %s41 = sphi 0, %s43
      %s44 = sphi 0, %s41
      %s45 = sphi 0, %s44
      %s61 = sphi 0, %s45
      %s65 = sphi 0, %s65
      %s67 = sphi 0, %s65
      %s68 = sphi 0, %s67
      %s82 = sphi 0, %s68
      %s86 = sphi 0, %s86
      %s88 = sphi 0, %s86
      %s89 = sphi 0, %s88
      %s103 = sphi 0, %s89
      %s107 = sphi 0, %s107
      %s109 = sphi 0, %s107
      %s110 = sphi 0, %s109
      %s124 = sphi 0, %s110
      %s130 = sphi 0, %s132
      %s133 = sphi 0, %s130
      %s134 = sphi 0, %s133
      %s150 = sphi 0, %s134
    $region4: #{tpu_custom_call.1} parent=1 // loop_header_branch
      %20 = sbr.rel (%p18) target = $region8
    $region5: #{tpu_custom_call.1} parent=1 // loop_body
      %s22 = ssub.s32 %s17, 1
      %s23 = ssub.s32 %s17, 2
      %s30 = sadd.s32 1, %s25
      %p31 = scmp.ge.s32.totalorder %s30, 1
      %s32 = scalar_select %p31, 0, %s30
      %s33 = sadd.s32 1, %s24
      %s34 = scalar_select %p31, %s33, %s24
      %p35 = scmp.ge.s32.totalorder %s34, 2
      %s36 = scalar_select %p35, 0, %s34
      %s37 = ssub.s32 %s24, %s36
      %s38 = ssub.s32 %s25, %s32
      %s39 = sor.u32 %s37, %s38
      %p40 = scmp.eq.s32.totalorder %s39, 0
      %s42 = sadd.s32 %s41, 1
      %s43 = scalar_select %p40, %s41, %s42
      %p46 = pneg %p40
      %p47 = scmp.eq.s32.totalorder %s17, 1
      %p48 = por %p46, %p47
      %p49 = scmp.ne.s32.totalorder %s41, %s44
      %p50 = scmp.eq.s32.totalorder %s17, 0
      %p51 = por %p49, %p50
      %p52 = scmp.ne.s32.totalorder %s41, %s44
      %p53 = scmp.eq.s32.totalorder %s22, 1
      %p54 = por %p52, %p53
      %p55 = scmp.ne.s32.totalorder %s44, %s45
      %p56 = scmp.eq.s32.totalorder %s22, 0
      %p57 = por %p55, %p56
      %p58 = scmp.ne.s32.totalorder %s44, %s45
      %p59 = scmp.eq.s32.totalorder %s23, 1
      %p60 = por %p58, %p59
      %p62 = scmp.ne.s32.totalorder %s45, %s61
      %p63 = scmp.eq.s32.totalorder %s23, 0
      %p64 = por %p62, %p63
      %s66 = sadd.s32 %s65, 1
      %p69 = scmp.eq.s32.totalorder %s17, 1
      %p70 = scmp.ne.s32.totalorder %s65, %s67
      %p71 = scmp.eq.s32.totalorder %s17, 0
      %p72 = por %p70, %p71
      %p73 = scmp.ne.s32.totalorder %s65, %s67
      %p74 = scmp.eq.s32.totalorder %s22, 1
      %p75 = por %p73, %p74
      %p76 = scmp.ne.s32.totalorder %s67, %s68
      %p77 = scmp.eq.s32.totalorder %s22, 0
      %p78 = por %p76, %p77
      %p79 = scmp.ne.s32.totalorder %s67, %s68
      %p80 = scmp.eq.s32.totalorder %s23, 1
      %p81 = por %p79, %p80
      %p83 = scmp.ne.s32.totalorder %s68, %s82
      %p84 = scmp.eq.s32.totalorder %s23, 0
      %p85 = por %p83, %p84
      %s87 = sadd.s32 %s86, 1
      %p90 = scmp.eq.s32.totalorder %s17, 1
      %p91 = scmp.ne.s32.totalorder %s86, %s88
      %p92 = scmp.eq.s32.totalorder %s17, 0
      %p93 = por %p91, %p92
      %p94 = scmp.ne.s32.totalorder %s86, %s88
      %p95 = scmp.eq.s32.totalorder %s22, 1
      %p96 = por %p94, %p95
      %p97 = scmp.ne.s32.totalorder %s88, %s89
      %p98 = scmp.eq.s32.totalorder %s22, 0
      %p99 = por %p97, %p98
      %p100 = scmp.ne.s32.totalorder %s88, %s89
      %p101 = scmp.eq.s32.totalorder %s23, 1
      %p102 = por %p100, %p101
      %p104 = scmp.ne.s32.totalorder %s89, %s103
      %p105 = scmp.eq.s32.totalorder %s23, 0
      %p106 = por %p104, %p105
      %s108 = sadd.s32 %s107, 1
      %p111 = scmp.eq.s32.totalorder %s17, 1
      %p112 = scmp.ne.s32.totalorder %s107, %s109
      %p113 = scmp.eq.s32.totalorder %s17, 0
      %p114 = por %p112, %p113
      %p115 = scmp.ne.s32.totalorder %s107, %s109
      %p116 = scmp.eq.s32.totalorder %s22, 1
      %p117 = por %p115, %p116
      %p118 = scmp.ne.s32.totalorder %s109, %s110
      %p119 = scmp.eq.s32.totalorder %s22, 0
      %p120 = por %p118, %p119
      %p121 = scmp.ne.s32.totalorder %s109, %s110
      %p122 = scmp.eq.s32.totalorder %s23, 1
      %p123 = por %p121, %p122
      %p125 = scmp.ne.s32.totalorder %s110, %s124
      %p126 = scmp.eq.s32.totalorder %s23, 0
      %p127 = por %p125, %p126
      %s128 = ssub.s32 %s24, %s36
      %p129 = scmp.eq.s32.totalorder %s128, 0
      %s131 = sadd.s32 %s130, 1
      %s132 = scalar_select %p129, %s130, %s131
      %p135 = pneg %p129
      %p136 = scmp.eq.s32.totalorder %s17, 1
      %p137 = por %p135, %p136
      %p138 = scmp.ne.s32.totalorder %s130, %s133
      %p139 = scmp.eq.s32.totalorder %s17, 0
      %p140 = por %p138, %p139
      %p141 = scmp.ne.s32.totalorder %s130, %s133
      %p142 = scmp.eq.s32.totalorder %s22, 1
      %p143 = por %p141, %p142
      %p144 = scmp.ne.s32.totalorder %s133, %s134
      %p145 = scmp.eq.s32.totalorder %s22, 0
      %p146 = por %p144, %p145
      %p147 = scmp.ne.s32.totalorder %s133, %s134
      %p148 = scmp.eq.s32.totalorder %s23, 1
      %p149 = por %p147, %p148
      %p151 = scmp.ne.s32.totalorder %s134, %s150
      %p152 = scmp.eq.s32.totalorder %s23, 0
      %p153 = por %p151, %p152
      %p154 = scmp.le.s32.totalorder 1, %s17
      %p155 = scmp.lt.s32.totalorder %s17, 3
      %p156 = pnand %p154, %p155
      %p157 = pneg %p156
      // Predicated region
      $region9: #{tpu_custom_call.1} parent=5 // pred_check
        _
      $region10: #{tpu_custom_call.1} parent=5 // pred_check_branch
        %159 = sbr.rel (%p156) target = $region12
      $region11: #{tpu_custom_call.1} parent=5 // pred_region
        %s160 = ssub.s32 %s17, 1
        // Predicated region
        $region13: #{tpu_custom_call.1} parent=11 // pred_check
          %p161 = pneg %p78
        $region14: #{tpu_custom_call.1} parent=11 // pred_check_branch
          %163 = sbr.rel (%p161) target = $region16
        $region15: #{tpu_custom_call.1} parent=11 // pred_region
          %s165 = ssub.s32 256, 256
          %166 = vsyncadd [#allocation7], %s165
          %s168 = sshll.u32 [#allocation6], 4
          %s169 = int_to_ptr.vmem [resolvable:$true] %s168
          %171 = dma.hbm_to_vmem [thread:$0]  %s1, 256, %s169, [#allocation7]
        $region16: #{tpu_custom_call.1} parent=11 // pred_fallthru
          _
        // Predicated region
        $region17: #{tpu_custom_call.1} parent=11 // pred_check
          %p172 = pneg %p99
        $region18: #{tpu_custom_call.1} parent=11 // pred_check_branch
          %174 = sbr.rel (%p172) target = $region20
        $region19: #{tpu_custom_call.1} parent=11 // pred_region
          _
        $region20: #{tpu_custom_call.1} parent=11 // pred_fallthru
          _
        // Predicated region
        $region21: #{tpu_custom_call.1} parent=11 // pred_check
          %p175 = pneg %p120
        $region22: #{tpu_custom_call.1} parent=11 // pred_check_branch
          %177 = sbr.rel (%p175) target = $region24
        $region23: #{tpu_custom_call.1} parent=11 // pred_region
          %s179 = ssub.s32 2048, 2048
          %180 = vsyncadd [#allocation7], %s179
          %s181 = sshll.u32 [#allocation8], 4
          %s182 = int_to_ptr.vmem [resolvable:$true] %s181
          %187 = dma.hbm_to_vmem [thread:$0]  %s3, 2048, %s182, [#allocation7], 64, 64, 4
        $region24: #{tpu_custom_call.1} parent=11 // pred_fallthru
          _
      $region12: #{tpu_custom_call.1} parent=5 // pred_fallthru
        _
      %p188 = scmp.lt.s32.totalorder %s17, 2
      // Predicated region
      $region25: #{tpu_custom_call.1} parent=5 // pred_check
        %p189 = pneg %p188
      $region26: #{tpu_custom_call.1} parent=5 // pred_check_branch
        %191 = sbr.rel (%p189) target = $region28
      $region27: #{tpu_custom_call.1} parent=5 // pred_region
        // Predicated region
        $region29: #{tpu_custom_call.1} parent=27 // pred_check
          %p192 = pneg %p51
        $region30: #{tpu_custom_call.1} parent=27 // pred_check_branch
          %194 = sbr.rel (%p192) target = $region32
        $region31: #{tpu_custom_call.1} parent=27 // pred_region
          %s195 = sand.u32 %s41, 1
          %s196 = scalar_lea.sflag [#allocation4], %s195
          %s197 = sand.u32 %s41, 1
          %s198 = smul.addr %s197, 512
          %s199 = scalar_lea.vmem [#allocation3], %s198
          %s200 = smul.u32 8, %s24
          %s201 = smul.u32 8, %s25
          %s203 = ssub.s32 8192, 8192
          %204 = vsyncadd %s196, %s203
          %s205 = smul.addr %s200, 8
          %s206 = sadd.s32 %s201, %s205
          %s207 = smul.addr %s206, 128
          %s208 = scalar_lea.hbm %s0, %s207
          %s209 = sshll.u32 %s199, 4
          %s210 = int_to_ptr.vmem [resolvable:$true] %s209
          %215 = dma.hbm_to_vmem [thread:$0]  %s208, 8192, %s210, %s196, 1024, 1024, 64
        $region32: #{tpu_custom_call.1} parent=27 // pred_fallthru
          _
      $region28: #{tpu_custom_call.1} parent=5 // pred_fallthru
        _
      %p216 = scmp.le.s32.totalorder 1, %s17
      %p217 = scmp.lt.s32.totalorder %s17, 3
      %p218 = pnand %p216, %p217
      %p219 = pneg %p218
      // Predicated region
      $region33: #{tpu_custom_call.1} parent=5 // pred_check
        _
      $region34: #{tpu_custom_call.1} parent=5 // pred_check_branch
        %221 = sbr.rel (%p218) target = $region36
      $region35: #{tpu_custom_call.1} parent=5 // pred_region
        %s222 = ssub.s32 %s17, 1
        %s223 = sand.u32 %s44, 1
        %s224 = scalar_lea.sflag [#allocation4], %s223
        %s225 = sand.u32 %s44, 1
        %s226 = smul.addr %s225, 512
        %s227 = scalar_lea.vmem [#allocation3], %s226
        // Predicated region
        $region37: #{tpu_custom_call.1} parent=35 // pred_check
          %p228 = pneg %p57
        $region38: #{tpu_custom_call.1} parent=35 // pred_check_branch
          %230 = sbr.rel (%p228) target = $region40
        $region39: #{tpu_custom_call.1} parent=35 // pred_region
          %231 = dma.done %s224, 8192
        $region40: #{tpu_custom_call.1} parent=35 // pred_fallthru
          _
        // Predicated region
        $region41: #{tpu_custom_call.1} parent=35 // pred_check
          %p232 = pneg %p78
        $region42: #{tpu_custom_call.1} parent=35 // pred_check_branch
          %234 = sbr.rel (%p232) target = $region44
        $region43: #{tpu_custom_call.1} parent=35 // pred_region
          %235 = dma.done [#allocation7], 256
        $region44: #{tpu_custom_call.1} parent=35 // pred_fallthru
          _
        // Predicated region
        $region45: #{tpu_custom_call.1} parent=35 // pred_check
          %p236 = pneg %p120
        $region46: #{tpu_custom_call.1} parent=35 // pred_check_branch
          %238 = sbr.rel (%p236) target = $region48
        $region47: #{tpu_custom_call.1} parent=35 // pred_region
          %239 = dma.done [#allocation7], 2048
        $region48: #{tpu_custom_call.1} parent=35 // pred_fallthru
          _
        %s240 = sand.u32 %s44, 1
        %s241 = scalar_lea.sflag [#allocation4], %s240
        %s242 = sand.u32 %s44, 1
        %s243 = smul.addr %s242, 512
        %s244 = scalar_lea.vmem [#allocation3], %s243
        %p245 = pneg %p57
        %p246 = pneg %p54
        %p247 = pneg %p78
        %p248 = pneg %p75
        %p249 = pneg %p99
        %p250 = pneg %p96
        %p251 = pneg %p120
        %p252 = pneg %p117
        %p253 = pneg %p146
        %p254 = pneg %p143
        %s255 = sand.u32 %s133, 1
        %s256 = scalar_lea.sflag [#allocation5], %s255
        %s257 = sand.u32 %s133, 1
        %s258 = smul.addr %s257, 8
        %s259 = scalar_lea.vmem [#allocation9], %s258
        %s260 = smul.u32 8, %s26
        %s261 = smul.u32 8, %s27
        %p263 = scmp.eq.s32.totalorder %s27, 0
        // Predicated region
        $region49: #{tpu_custom_call.1} parent=35 // pred_check
          %p264 = pneg %p263
        $region50: #{tpu_custom_call.1} parent=35 // pred_check_branch
          %266 = sbr.rel (%p264) target = $region52
        $region51: #{tpu_custom_call.1} parent=35 // pred_region
          %267 = vst [vmem:[#allocation2] sm:$0xff] 0.0
          %268 = vst [vmem:[#allocation2 + $0x8] sm:$0xff] 0.0
          %269 = vst [vmem:[#allocation2 + $0x10] sm:$0xff] 0.0
          %270 = vst [vmem:[#allocation2 + $0x18] sm:$0xff] 0.0
          %271 = vst [vmem:[#allocation2 + $0x20] sm:$0xff] 0.0
          %272 = vst [vmem:[#allocation2 + $0x28] sm:$0xff] 0.0
          %273 = vst [vmem:[#allocation2 + $0x30] sm:$0xff] 0.0
          %274 = vst [vmem:[#allocation2 + $0x38] sm:$0xff] 0.0
        $region52: #{tpu_custom_call.1} parent=35 // pred_fallthru
          _
        %v275 = vld [vmem:[#allocation2] sm:$0xff]
        %v276 = vld [vmem:[#allocation2 + $0x8] sm:$0xff]
        %v277 = vld [vmem:[#allocation2 + $0x10] sm:$0xff]
        %v278 = vld [vmem:[#allocation2 + $0x18] sm:$0xff]
        %v279 = vld [vmem:[#allocation2 + $0x20] sm:$0xff]
        %v280 = vld [vmem:[#allocation2 + $0x28] sm:$0xff]
        %v281 = vld [vmem:[#allocation2 + $0x30] sm:$0xff]
        %v282 = vld [vmem:[#allocation2 + $0x38] sm:$0xff]
        %v283 = vld [vmem:[%s227] sm:$0xff]
        %v284 = vld [vmem:[%s227 + $0x40] sm:$0xff]
        %v285 = vld [vmem:[%s227 + $0x80] sm:$0xff]
        %v286 = vld [vmem:[%s227 + $0xc0] sm:$0xff]
        %v287 = vld [vmem:[%s227 + $0x100] sm:$0xff]
        %v288 = vld [vmem:[%s227 + $0x140] sm:$0xff]
        %v289 = vld [vmem:[%s227 + $0x180] sm:$0xff]
        %v290 = vld [vmem:[%s227 + $0x1c0] sm:$0xff]
        %v291 = vadd.f32 %v275, %v283
        %v292 = vadd.f32 %v276, %v284
        %v293 = vadd.f32 %v277, %v285
        %v294 = vadd.f32 %v278, %v286
        %v295 = vadd.f32 %v279, %v287
        %v296 = vadd.f32 %v280, %v288
        %v297 = vadd.f32 %v281, %v289
        %v298 = vadd.f32 %v282, %v290
        %v299 = vld [vmem:[%s227 + $0x8] sm:$0xff]
        %v300 = vld [vmem:[%s227 + $0x48] sm:$0xff]
        %v301 = vld [vmem:[%s227 + $0x88] sm:$0xff]
        %v302 = vld [vmem:[%s227 + $0xc8] sm:$0xff]
        %v303 = vld [vmem:[%s227 + $0x108] sm:$0xff]
        %v304 = vld [vmem:[%s227 + $0x148] sm:$0xff]
        %v305 = vld [vmem:[%s227 + $0x188] sm:$0xff]
        %v306 = vld [vmem:[%s227 + $0x1c8] sm:$0xff]
        %v307 = vadd.f32 %v291, %v299
        %v308 = vadd.f32 %v292, %v300
        %v309 = vadd.f32 %v293, %v301
        %v310 = vadd.f32 %v294, %v302
        %v311 = vadd.f32 %v295, %v303
        %v312 = vadd.f32 %v296, %v304
        %v313 = vadd.f32 %v297, %v305
        %v314 = vadd.f32 %v298, %v306
        %v315 = vld [vmem:[%s227 + $0x10] sm:$0xff]
        %v316 = vld [vmem:[%s227 + $0x50] sm:$0xff]
        %v317 = vld [vmem:[%s227 + $0x90] sm:$0xff]
        %v318 = vld [vmem:[%s227 + $0xd0] sm:$0xff]
        %v319 = vld [vmem:[%s227 + $0x110] sm:$0xff]
        %v320 = vld [vmem:[%s227 + $0x150] sm:$0xff]
        %v321 = vld [vmem:[%s227 + $0x190] sm:$0xff]
        %v322 = vld [vmem:[%s227 + $0x1d0] sm:$0xff]
        %v323 = vadd.f32 %v307, %v315
        %v324 = vadd.f32 %v308, %v316
        %v325 = vadd.f32 %v309, %v317
        %v326 = vadd.f32 %v310, %v318
        %v327 = vadd.f32 %v311, %v319
        %v328 = vadd.f32 %v312, %v320
        %v329 = vadd.f32 %v313, %v321
        %v330 = vadd.f32 %v314, %v322
        %v331 = vld [vmem:[%s227 + $0x18] sm:$0xff]
        %v332 = vld [vmem:[%s227 + $0x58] sm:$0xff]
        %v333 = vld [vmem:[%s227 + $0x98] sm:$0xff]
        %v334 = vld [vmem:[%s227 + $0xd8] sm:$0xff]
        %v335 = vld [vmem:[%s227 + $0x118] sm:$0xff]
        %v336 = vld [vmem:[%s227 + $0x158] sm:$0xff]
        %v337 = vld [vmem:[%s227 + $0x198] sm:$0xff]
        %v338 = vld [vmem:[%s227 + $0x1d8] sm:$0xff]
        %v339 = vadd.f32 %v323, %v331
        %v340 = vadd.f32 %v324, %v332
        %v341 = vadd.f32 %v325, %v333
        %v342 = vadd.f32 %v326, %v334
        %v343 = vadd.f32 %v327, %v335
        %v344 = vadd.f32 %v328, %v336
        %v345 = vadd.f32 %v329, %v337
        %v346 = vadd.f32 %v330, %v338
        %v347 = vld [vmem:[%s227 + $0x20] sm:$0xff]
        %v348 = vld [vmem:[%s227 + $0x60] sm:$0xff]
        %v349 = vld [vmem:[%s227 + $0xa0] sm:$0xff]
        %v350 = vld [vmem:[%s227 + $0xe0] sm:$0xff]
        %v351 = vld [vmem:[%s227 + $0x120] sm:$0xff]
        %v352 = vld [vmem:[%s227 + $0x160] sm:$0xff]
        %v353 = vld [vmem:[%s227 + $0x1a0] sm:$0xff]
        %v354 = vld [vmem:[%s227 + $0x1e0] sm:$0xff]
        %v355 = vadd.f32 %v339, %v347
        %v356 = vadd.f32 %v340, %v348
        %v357 = vadd.f32 %v341, %v349
        %v358 = vadd.f32 %v342, %v350
        %v359 = vadd.f32 %v343, %v351
        %v360 = vadd.f32 %v344, %v352
        %v361 = vadd.f32 %v345, %v353
        %v362 = vadd.f32 %v346, %v354
        %v363 = vld [vmem:[%s227 + $0x28] sm:$0xff]
        %v364 = vld [vmem:[%s227 + $0x68] sm:$0xff]
        %v365 = vld [vmem:[%s227 + $0xa8] sm:$0xff]
        %v366 = vld [vmem:[%s227 + $0xe8] sm:$0xff]
        %v367 = vld [vmem:[%s227 + $0x128] sm:$0xff]
        %v368 = vld [vmem:[%s227 + $0x168] sm:$0xff]
        %v369 = vld [vmem:[%s227 + $0x1a8] sm:$0xff]
        %v370 = vld [vmem:[%s227 + $0x1e8] sm:$0xff]
        %v371 = vadd.f32 %v355, %v363
        %v372 = vadd.f32 %v356, %v364
        %v373 = vadd.f32 %v357, %v365
        %v374 = vadd.f32 %v358, %v366
        %v375 = vadd.f32 %v359, %v367
        %v376 = vadd.f32 %v360, %v368
        %v377 = vadd.f32 %v361, %v369
        %v378 = vadd.f32 %v362, %v370
        %v379 = vld [vmem:[%s227 + $0x30] sm:$0xff]
        %v380 = vld [vmem:[%s227 + $0x70] sm:$0xff]
        %v381 = vld [vmem:[%s227 + $0xb0] sm:$0xff]
        %v382 = vld [vmem:[%s227 + $0xf0] sm:$0xff]
        %v383 = vld [vmem:[%s227 + $0x130] sm:$0xff]
        %v384 = vld [vmem:[%s227 + $0x170] sm:$0xff]
        %v385 = vld [vmem:[%s227 + $0x1b0] sm:$0xff]
        %v386 = vld [vmem:[%s227 + $0x1f0] sm:$0xff]
        %v387 = vadd.f32 %v371, %v379
        %v388 = vadd.f32 %v372, %v380
        %v389 = vadd.f32 %v373, %v381
        %v390 = vadd.f32 %v374, %v382
        %v391 = vadd.f32 %v375, %v383
        %v392 = vadd.f32 %v376, %v384
        %v393 = vadd.f32 %v377, %v385
        %v394 = vadd.f32 %v378, %v386
        %v395 = vld [vmem:[%s227 + $0x38] sm:$0xff]
        %v396 = vld [vmem:[%s227 + $0x78] sm:$0xff]
        %v397 = vld [vmem:[%s227 + $0xb8] sm:$0xff]
        %v398 = vld [vmem:[%s227 + $0xf8] sm:$0xff]
        %v399 = vld [vmem:[%s227 + $0x138] sm:$0xff]
        %v400 = vld [vmem:[%s227 + $0x178] sm:$0xff]
        %v401 = vld [vmem:[%s227 + $0x1b8] sm:$0xff]
        %v402 = vld [vmem:[%s227 + $0x1f8] sm:$0xff]
        %v403 = vadd.f32 %v387, %v395
        %v404 = vadd.f32 %v388, %v396
        %v405 = vadd.f32 %v389, %v397
        %v406 = vadd.f32 %v390, %v398
        %v407 = vadd.f32 %v391, %v399
        %v408 = vadd.f32 %v392, %v400
        %v409 = vadd.f32 %v393, %v401
        %v410 = vadd.f32 %v394, %v402
        %411 = vst [vmem:[#allocation2] sm:$0xff] %v403
        %412 = vst [vmem:[#allocation2 + $0x8] sm:$0xff] %v404
        %413 = vst [vmem:[#allocation2 + $0x10] sm:$0xff] %v405
        %414 = vst [vmem:[#allocation2 + $0x18] sm:$0xff] %v406
        %415 = vst [vmem:[#allocation2 + $0x20] sm:$0xff] %v407
        %416 = vst [vmem:[#allocation2 + $0x28] sm:$0xff] %v408
        %417 = vst [vmem:[#allocation2 + $0x30] sm:$0xff] %v409
        %418 = vst [vmem:[#allocation2 + $0x38] sm:$0xff] %v410
        // Predicated region
        $region53: #{tpu_custom_call.1} parent=35 // pred_check
          %p419 = pneg %p263
        $region54: #{tpu_custom_call.1} parent=35 // pred_check_branch
          %421 = sbr.rel (%p419) target = $region56
        $region55: #{tpu_custom_call.1} parent=35 // pred_region
          %v422 = vld [vmem:[#allocation2] sm:$0xff]
          %v423 = vld [vmem:[#allocation2 + $0x8] sm:$0xff]
          %v424 = vld [vmem:[#allocation2 + $0x10] sm:$0xff]
          %v425 = vld [vmem:[#allocation2 + $0x18] sm:$0xff]
          %v426 = vld [vmem:[#allocation2 + $0x20] sm:$0xff]
          %v427 = vld [vmem:[#allocation2 + $0x28] sm:$0xff]
          %v428 = vld [vmem:[#allocation2 + $0x30] sm:$0xff]
          %v429 = vld [vmem:[#allocation2 + $0x38] sm:$0xff]
          %430 = vadd.xlane.f32.xlu0 %v422
          %v431 = vpop.xlane.xlu0 %430
          %432 = vadd.xlane.f32.xlu0 %v423
          %v433 = vpop.xlane.xlu0 %432
          %434 = vadd.xlane.f32.xlu0 %v424
          %v435 = vpop.xlane.xlu0 %434
          %436 = vadd.xlane.f32.xlu0 %v425
          %v437 = vpop.xlane.xlu0 %436
          %438 = vadd.xlane.f32.xlu0 %v426
          %v439 = vpop.xlane.xlu0 %438
          %440 = vadd.xlane.f32.xlu0 %v427
          %v441 = vpop.xlane.xlu0 %440
          %442 = vadd.xlane.f32.xlu0 %v428
          %v443 = vpop.xlane.xlu0 %442
          %444 = vadd.xlane.f32.xlu0 %v429
          %v445 = vpop.xlane.xlu0 %444
          %v446 = vmul.f32 %v431, 0.0009765625
          %v447 = vmul.f32 %v433, 0.0009765625
          %v448 = vmul.f32 %v435, 0.0009765625
          %v449 = vmul.f32 %v437, 0.0009765625
          %v450 = vmul.f32 %v439, 0.0009765625
          %v451 = vmul.f32 %v441, 0.0009765625
          %v452 = vmul.f32 %v443, 0.0009765625
          %v453 = vmul.f32 %v445, 0.0009765625
          %v454 = vld [vmem:[#allocation6] sm:$0xff]
          %v455 = vld [vmem:[#allocation6 + $0x8] sm:$0xff]
          %v456 = vld [vmem:[%s2] sm:$0x3]
          %v458 = vlaneseq
          %v459 = vshrl.u32 %v458, 7
          %v460 = vsub.s32 0, %v459
          %v461 = vrot.slane %v456, %v460
          %v462 = vlaneseq
          %v463 = vshrl.u32 %v462, 7
          %v464 = vsub.s32 1, %v463
          %v465 = vrot.slane %v456, %v464
          %v476 = vlaneseq
          %v477 = vand.u32 %v476, 127
          %v478 = vlaneseq
          %v479 = vshrl.u32 %v478, 7
          %v480 = vsub.s32 %v477, %v479
          %v481 = vrot.slane %v446, %v480
          %v482 = vlaneseq
          %v483 = vshrl.u32 %v482, 7
          %v484 = vsub.s32 %v477, %v483
          %v485 = vrot.slane %v447, %v484
          %v486 = vlaneseq
          %v487 = vshrl.u32 %v486, 7
          %v488 = vsub.s32 %v477, %v487
          %v489 = vrot.slane %v448, %v488
          %v490 = vlaneseq
          %v491 = vshrl.u32 %v490, 7
          %v492 = vsub.s32 %v477, %v491
          %v493 = vrot.slane %v449, %v492
          %v494 = vlaneseq
          %v495 = vshrl.u32 %v494, 7
          %v496 = vsub.s32 %v477, %v495
          %v497 = vrot.slane %v450, %v496
          %v498 = vlaneseq
          %v499 = vshrl.u32 %v498, 7
          %v500 = vsub.s32 %v477, %v499
          %v501 = vrot.slane %v451, %v500
          %v502 = vlaneseq
          %v503 = vshrl.u32 %v502, 7
          %v504 = vsub.s32 %v477, %v503
          %v505 = vrot.slane %v452, %v504
          %v506 = vlaneseq
          %v507 = vshrl.u32 %v506, 7
          %v508 = vsub.s32 %v477, %v507
          %v509 = vrot.slane %v453, %v508
          %vm510 = vcmask 1041409
          %v511 = vsel %vm510, %v485, %v481
          %vm512 = vcmask 1042434
          %v513 = vsel %vm512, %v489, %v511
          %vm514 = vcmask 1043459
          %v515 = vsel %vm514, %v493, %v513
          %vm516 = vcmask 1044484
          %v517 = vsel %vm516, %v497, %v515
          %vm518 = vcmask 1045509
          %v519 = vsel %vm518, %v501, %v517
          %vm520 = vcmask 1046534
          %v521 = vsel %vm520, %v505, %v519
          %vm522 = vcmask 1047559
          %v523 = vsel %vm522, %v509, %v521
          %vm524 = vcmask 64512
          %v525 = vsel %vm524, %v523, 0
          %527 = vmatprep.subr.mxu0 %v455
          %528 = vmatpush1.msra.mxu0 %v454
          %529 = vmatprep.subr.mxu0 0.0
          %530 = vmatpush1.msra.mxu0 0.0
          %531 = vmatprep.subr.mxu0 0.0
          %532 = vmatpush1.msra.mxu0 0.0
          %533 = vmatprep.subr.mxu0 0.0
          %534 = vmatpush1.msra.mxu0 0.0
          %535 = vmatprep.subr.mxu0 0.0
          %536 = vmatpush1.msra.mxu0 0.0
          %537 = vmatprep.subr.mxu0 0.0
          %538 = vmatpush1.msra.mxu0 0.0
          %539 = vmatprep.subr.mxu0 0.0
          %540 = vmatpush1.msra.mxu0 0.0
          %541 = vmatprep.subr.mxu0 0.0
          %542 = vmatpush1.msra.mxu0 0.0
          %543 = vmatprep.subr.mxu0 0.0
          %544 = vmatpush1.msra.mxu0 0.0
          %545 = vmatprep.subr.mxu0 0.0
          %546 = vmatpush1.msra.mxu0 0.0
          %547 = vmatprep.subr.mxu0 0.0
          %548 = vmatpush1.msra.mxu0 0.0
          %549 = vmatprep.subr.mxu0 0.0
          %550 = vmatpush1.msra.mxu0 0.0
          %551 = vmatprep.subr.mxu0 0.0
          %552 = vmatpush1.msra.mxu0 0.0
          %553 = vmatprep.subr.mxu0 0.0
          %554 = vmatpush1.msra.mxu0 0.0
          %555 = vmatprep.subr.mxu0 0.0
          %556 = vmatpush1.msra.mxu0 0.0
          %557 = vmatprep.subr.mxu0 0.0
          %558 = vmatpush1.msra.mxu0 0.0
          %559 = vmatprep.subr.mxu0 0.0
          %560 = vmatpush1.msra.mxu0 0.0
          %561 = vmatprep.subr.mxu0 0.0
          %562 = vmatpush1.msra.mxu0 0.0
          %563 = vmatprep.subr.mxu0 0.0
          %564 = vmatpush1.msra.mxu0 0.0
          %565 = vmatprep.subr.mxu0 0.0
          %566 = vmatpush1.msra.mxu0 0.0
          %567 = vmatprep.subr.mxu0 0.0
          %568 = vmatpush1.msra.mxu0 0.0
          %569 = vmatprep.subr.mxu0 0.0
          %570 = vmatpush1.msra.mxu0 0.0
          %571 = vmatprep.subr.mxu0 0.0
          %572 = vmatpush1.msra.mxu0 0.0
          %573 = vmatprep.subr.mxu0 0.0
          %574 = vmatpush1.msra.mxu0 0.0
          %575 = vmatprep.subr.mxu0 0.0
          %576 = vmatpush1.msra.mxu0 0.0
          %577 = vmatprep.subr.mxu0 0.0
          %578 = vmatpush1.msra.mxu0 0.0
          %579 = vmatprep.subr.mxu0 0.0
          %580 = vmatpush1.msra.mxu0 0.0
          %581 = vmatprep.subr.mxu0 0.0
          %582 = vmatpush1.msra.mxu0 0.0
          %583 = vmatprep.subr.mxu0 0.0
          %584 = vmatpush1.msra.mxu0 0.0
          %585 = vmatprep.subr.mxu0 0.0
          %586 = vmatpush1.msra.mxu0 0.0
          %587 = vmatprep.subr.mxu0 0.0
          %588 = vmatpush1.msra.mxu0 0.0
          %589 = vmatprep.subr.mxu0 0.0
          %590 = vmatpush1.msra.mxu0 0.0
          %591 = vmatprep.mubr.f32.mxu0 0.0
          %592 = vmatmul.mubr.f32.gmra.mrb[0].mxu0 %v525
          %v593 = vpop.f32.mrb[0].mxu0
          %v594 = vadd.f32 %v461, %v593
          %v595 = vpop.f32.mrb[0].mxu0
          %v596 = vadd.f32 %v465, %v595
          %597 = vdwg.mxu0
          %v598 = vadd.s32 %v477, 128
          %v599 = vmax.f32 %v594, %v596
          %600 = vmax.xlane.f32.xlu0 %v599
          %v601 = vpop.xlane.xlu0 %600
          %vm602 = vcmp.eq.f32.partialorder %v594, %v601
          %vm603 = vcmp.eq.f32.partialorder %v596, %v601
          %v604 = vsel %vm602, %v477, 256
          %v605 = vsel %vm603, %v598, 256
          %vm606 = vcmp.lt.s32.totalorder %v604, %v605
          %v607 = vsel %vm606, %v604, %v605
          %v608 = vand.u32 %v607, 65535
          %v609 = vshra.s32 %v607, 16
          %v610 = vcvt.s32.f32 %v608
          %v611 = vcvt.s32.f32 %v609
          %612 = vmin.xlane.f32.xlu0 %v611
          %v613 = vpop.xlane.xlu0 %612
          %vm614 = vcmp.eq.f32.partialorder %v611, %v613
          %v615 = vsel %vm614, %v610, inf
          %616 = vmin.xlane.f32.xlu0 %v615
          %v617 = vpop.xlane.xlu0 %616
          %v618 = vcvt.f32.s32 %v617
          %v619 = vcvt.f32.s32 %v613
          %v620 = vshll.u32 %v619, 16
          %v621 = vadd.s32 %v620, %v618
          %vm622 = vcmp.eq.s32.totalorder %v477, %v621
          %vm623 = vcmp.eq.s32.totalorder %v598, %v621
          %v624 = vsel %vm622, 1, 0
          %v625 = vsel %vm623, 1, 0
          %v626 = vcvt.s32.f32 %v624
          %v627 = vcvt.s32.f32 %v625
          %v628 = vpack.c.bf16 %v626, %v626
          %v629 = vpack.c.bf16 %v627, %v627
          %v630 = vld [vmem:[#allocation8] sm:$0xf]
          %v631 = vld [vmem:[#allocation8 + $0x4] sm:$0xf]
          %v632 = vld [vmem:[#allocation8 + $0x8] sm:$0xf]
          %v633 = vld [vmem:[#allocation8 + $0xc] sm:$0xf]
          %v634 = vld [vmem:[#allocation8 + $0x10] sm:$0xf]
          %v635 = vld [vmem:[#allocation8 + $0x14] sm:$0xf]
          %v636 = vld [vmem:[#allocation8 + $0x18] sm:$0xf]
          %v637 = vld [vmem:[#allocation8 + $0x1c] sm:$0xf]
          %v638 = vld [vmem:[#allocation8 + $0x20] sm:$0xf]
          %v639 = vld [vmem:[#allocation8 + $0x24] sm:$0xf]
          %v640 = vld [vmem:[#allocation8 + $0x28] sm:$0xf]
          %v641 = vld [vmem:[#allocation8 + $0x2c] sm:$0xf]
          %v642 = vld [vmem:[#allocation8 + $0x30] sm:$0xf]
          %v643 = vld [vmem:[#allocation8 + $0x34] sm:$0xf]
          %v644 = vld [vmem:[#allocation8 + $0x38] sm:$0xf]
          %v645 = vld [vmem:[#allocation8 + $0x3c] sm:$0xf]
          %v646 = vld [vmem:[#allocation8 + $0x40] sm:$0xf]
          %v647 = vld [vmem:[#allocation8 + $0x44] sm:$0xf]
          %v648 = vld [vmem:[#allocation8 + $0x48] sm:$0xf]
          %v649 = vld [vmem:[#allocation8 + $0x4c] sm:$0xf]
          %v650 = vld [vmem:[#allocation8 + $0x50] sm:$0xf]
          %v651 = vld [vmem:[#allocation8 + $0x54] sm:$0xf]
          %v652 = vld [vmem:[#allocation8 + $0x58] sm:$0xf]
          %v653 = vld [vmem:[#allocation8 + $0x5c] sm:$0xf]
          %v654 = vld [vmem:[#allocation8 + $0x60] sm:$0xf]
          %v655 = vld [vmem:[#allocation8 + $0x64] sm:$0xf]
          %v656 = vld [vmem:[#allocation8 + $0x68] sm:$0xf]
          %v657 = vld [vmem:[#allocation8 + $0x6c] sm:$0xf]
          %v658 = vld [vmem:[#allocation8 + $0x70] sm:$0xf]
          %v659 = vld [vmem:[#allocation8 + $0x74] sm:$0xf]
          %v660 = vld [vmem:[#allocation8 + $0x78] sm:$0xf]
          %v661 = vld [vmem:[#allocation8 + $0x7c] sm:$0xf]
          %v694 = vunpack.c.l.b16 %v630
          %v695 = vunpack.c.l.b16 %v631
          %v696 = vunpack.c.l.b16 %v632
          %v697 = vunpack.c.l.b16 %v633
          %v698 = vunpack.c.l.b16 %v634
          %v699 = vunpack.c.l.b16 %v635
          %v700 = vunpack.c.l.b16 %v636
          %v701 = vunpack.c.l.b16 %v637
          %v702 = vunpack.c.l.b16 %v638
          %v703 = vunpack.c.l.b16 %v639
          %v704 = vunpack.c.l.b16 %v640
          %v705 = vunpack.c.l.b16 %v641
          %v706 = vunpack.c.l.b16 %v642
          %v707 = vunpack.c.l.b16 %v643
          %v708 = vunpack.c.l.b16 %v644
          %v709 = vunpack.c.l.b16 %v645
          %v710 = vunpack.c.l.b16 %v646
          %v711 = vunpack.c.l.b16 %v647
          %v712 = vunpack.c.l.b16 %v648
          %v713 = vunpack.c.l.b16 %v649
          %v714 = vunpack.c.l.b16 %v650
          %v715 = vunpack.c.l.b16 %v651
          %v716 = vunpack.c.l.b16 %v652
          %v717 = vunpack.c.l.b16 %v653
          %v718 = vunpack.c.l.b16 %v654
          %v719 = vunpack.c.l.b16 %v655
          %v720 = vunpack.c.l.b16 %v656
          %v721 = vunpack.c.l.b16 %v657
          %v722 = vunpack.c.l.b16 %v658
          %v723 = vunpack.c.l.b16 %v659
          %v724 = vunpack.c.l.b16 %v660
          %v725 = vunpack.c.l.b16 %v661
          %v726 = vpack.c.b16 %v695, %v694
          %v727 = vpack.c.b16 %v697, %v696
          %v728 = vpack.c.b16 %v699, %v698
          %v729 = vpack.c.b16 %v701, %v700
          %v730 = vpack.c.b16 %v703, %v702
          %v731 = vpack.c.b16 %v705, %v704
          %v732 = vpack.c.b16 %v707, %v706
          %v733 = vpack.c.b16 %v709, %v708
          %v734 = vpack.c.b16 %v711, %v710
          %v735 = vpack.c.b16 %v713, %v712
          %v736 = vpack.c.b16 %v715, %v714
          %v737 = vpack.c.b16 %v717, %v716
          %v738 = vpack.c.b16 %v719, %v718
          %v739 = vpack.c.b16 %v721, %v720
          %v740 = vpack.c.b16 %v723, %v722
          %v741 = vpack.c.b16 %v725, %v724
          %758 = vmatprep.subr.bf16.mxu0 0
          %759 = vmatpush1.bf16.msra.mxu0 %v726
          %760 = vmatprep.subr.bf16.mxu0 0
          %761 = vmatpush1.bf16.msra.mxu0 %v727
          %762 = vmatprep.subr.bf16.mxu0 0
          %763 = vmatpush1.bf16.msra.mxu0 %v728
          %764 = vmatprep.subr.bf16.mxu0 0
          %765 = vmatpush1.bf16.msra.mxu0 %v729
          %766 = vmatprep.subr.bf16.mxu0 0
          %767 = vmatpush1.bf16.msra.mxu0 %v730
          %768 = vmatprep.subr.bf16.mxu0 0
          %769 = vmatpush1.bf16.msra.mxu0 %v731
          %770 = vmatprep.subr.bf16.mxu0 0
          %771 = vmatpush1.bf16.msra.mxu0 %v732
          %772 = vmatprep.subr.bf16.mxu0 0
          %773 = vmatpush1.bf16.msra.mxu0 %v733
          %774 = vmatprep.subr.bf16.mxu0 0
          %775 = vmatpush1.bf16.msra.mxu0 %v734
          %776 = vmatprep.subr.bf16.mxu0 0
          %777 = vmatpush1.bf16.msra.mxu0 %v735
          %778 = vmatprep.subr.bf16.mxu0 0
          %779 = vmatpush1.bf16.msra.mxu0 %v736
          %780 = vmatprep.subr.bf16.mxu0 0
          %781 = vmatpush1.bf16.msra.mxu0 %v737
          %782 = vmatprep.subr.bf16.mxu0 0
          %783 = vmatpush1.bf16.msra.mxu0 %v738
          %784 = vmatprep.subr.bf16.mxu0 0
          %785 = vmatpush1.bf16.msra.mxu0 %v739
          %786 = vmatprep.subr.bf16.mxu0 0
          %787 = vmatpush1.bf16.msra.mxu0 %v740
          %788 = vmatprep.subr.bf16.mxu0 0
          %789 = vmatpush1.bf16.msra.mxu0 %v741
          %790 = vmatprep.mubr.bf16.mxu0 %v629
          %791 = vmatmul.mubr.bf16.gmra.mrb[0].mxu0 %v628
          %v792 = vpop.f32.mrb[0].mxu0
          %v793 = vadd.f32 0.0, %v792
          %v794 = vpop.f32.mrb[0].mxu0
          %v795 = vpop.f32.mrb[0].mxu0
          %v796 = vpop.f32.mrb[0].mxu0
          %797 = vdwg.mxu0
          %798 = vst [vmem:[%s259] sm:$0xff] %v793
        $region56: #{tpu_custom_call.1} parent=35 // pred_fallthru
          _
        %s799 = sand.u32 %s133, 1
        %s800 = scalar_lea.sflag [#allocation5], %s799
        %s801 = sand.u32 %s133, 1
        %s802 = smul.addr %s801, 8
        %s803 = scalar_lea.vmem [#allocation9], %s802
        // Predicated region
        $region57: #{tpu_custom_call.1} parent=35 // pred_check
          %p804 = pneg %p143
        $region58: #{tpu_custom_call.1} parent=35 // pred_check_branch
          %806 = sbr.rel (%p804) target = $region60
        $region59: #{tpu_custom_call.1} parent=35 // pred_region
          %s808 = ssub.s32 128, 128
          %809 = vsyncadd %s800, %s808
          %s810 = smul.addr %s26, 128
          %s811 = scalar_lea.hbm %s4, %s810
          %s813 = sshll.u32 %s803, 4
          %s814 = int_to_ptr.vmem [resolvable:$true] %s813
          %816 = dma.vmem_to_hbm [thread:$0]  %s814, 128, %s811, %s800
        $region60: #{tpu_custom_call.1} parent=35 // pred_fallthru
          _
      $region36: #{tpu_custom_call.1} parent=5 // pred_fallthru
        _
      %p817 = scmp.le.s32.totalorder 2, %s17
      // Predicated region
      $region61: #{tpu_custom_call.1} parent=5 // pred_check
        %p818 = pneg %p817
      $region62: #{tpu_custom_call.1} parent=5 // pred_check_branch
        %820 = sbr.rel (%p818) target = $region64
      $region63: #{tpu_custom_call.1} parent=5 // pred_region
        %s821 = ssub.s32 %s17, 2
        // Predicated region
        $region65: #{tpu_custom_call.1} parent=63 // pred_check
          %p822 = pneg %p149
        $region66: #{tpu_custom_call.1} parent=63 // pred_check_branch
          %824 = sbr.rel (%p822) target = $region68
        $region67: #{tpu_custom_call.1} parent=63 // pred_region
          %s825 = sand.u32 %s134, 1
          %s826 = scalar_lea.sflag [#allocation5], %s825
          %s827 = sand.u32 %s134, 1
          %s828 = smul.addr %s827, 8
          %s829 = scalar_lea.vmem [#allocation9], %s828
          %830 = dma.done %s826, 128
        $region68: #{tpu_custom_call.1} parent=63 // pred_fallthru
          _
      $region64: #{tpu_custom_call.1} parent=5 // pred_fallthru
        _
    $region6: #{tpu_custom_call.1} parent=1 // loop_footer
      %s21 = sadd.s32 1, %s17
    $region7: #{tpu_custom_call.1} parent=1 // loop_footer_branch
      %16 = sbr.rel target = $region3
    $region8: #{tpu_custom_call.1} parent=1 // loop_exit
      _
    %831 = vsyncpa [#allocation4], 1
    %s832 = scalar_lea.sflag [#allocation4], 1
    %833 = vsyncpa %s832, 1
    %834 = vsyncpa [#allocation7], 1
    %835 = vsyncpa [#allocation5], 1
    %s836 = scalar_lea.sflag [#allocation5], 1
    %837 = vsyncpa %s836, 1

</llo_original>
